<compile_context>
chip_gen: v5e
topology: v5e:2x2
jax: 0.10.0
libtpu: 0.0.40
codegen_flags: <defaults>
</compile_context>

<pallas_src>
import math

import numpy as np
import jax
import jax.numpy as jnp
from jax.experimental import pallas as pl
from jax.experimental.pallas import tpu as pltpu


# ---------------------------------------------------------------------------
# Host-side construction of the fused upsample + pad/crop interpolation matrices
# ---------------------------------------------------------------------------
def _up_pad_matrix(size_in, pad_before, target_size):
    """Fused (2x bilinear upsample, align_corners=True) + pad/crop matrix.

    Row t of the (target_size, size_in) result holds the interpolation weights
    of upsampled index u = t - pad_before; rows outside the upsampled range are
    all zero (== F.pad's constant-0 padding).  Negative pad_before (cropping,
    i.e. negative F.pad) is handled by the same rule.
    """
    size_up = 2 * size_in
    m = np.zeros((target_size, size_in), dtype=np.float32)
    denom = max(size_up - 1, 1)
    for t in range(target_size):
        u = t - pad_before
        if 0 <= u < size_up:
            src = u * (size_in - 1) / denom
            i0 = int(math.floor(src))
            i1 = min(i0 + 1, size_in - 1)
            w1 = src - i0
            m[t, i0] += 1.0 - w1
            m[t, i1] += w1
    return m


# ---------------------------------------------------------------------------
# Tile-size selection helpers ((sublane, 128-lane)-padding aware VMEM accounting)
# ---------------------------------------------------------------------------
_SUBLANE = {4: 8, 2: 16, 1: 32}   # sublane tile per itemsize (f32 / bf16 / int8)


def _padded_tile_bytes(rows, cols, itemsize):
    """VMEM footprint of a (rows, cols) tile after sublane/128-lane padding."""
    sub = _SUBLANE.get(itemsize, 8)
    r = -(-rows // sub) * sub
    c = -(-cols // 128) * 128
    return r * c * itemsize


def _ceil_div(a, b):
    return -(-a // b)


def _pick_tile_channels(nc, cap):
    """Largest channel tile under the VMEM cap that still leaves >=4 grid steps
    (software-pipeline ramp; >=2 steps/TensorCore on v7x), preferring an even
    step count when it does not shrink the tile by more than 25%."""
    cap = int(max(1, min(cap, nc)))
    min_steps = _ceil_div(nc, cap)               # fewest steps VMEM allows
    target_steps = max(min_steps, min(nc, 4))    # prefer >= 4 steps
    tc = _ceil_div(nc, target_steps)
    steps = _ceil_div(nc, tc)
    if steps % 2 == 1 and steps < nc:            # v7x: 2 TCs like an even count
        for s in range(steps + 1, min(nc, steps + 4) + 1):
            tc_alt = _ceil_div(nc, s)
            if _ceil_div(nc, tc_alt) % 2 == 0 and 4 * tc_alt >= 3 * tc:
                tc = tc_alt
                break
    return tc


# ---------------------------------------------------------------------------
# Kernel
# ---------------------------------------------------------------------------
def _make_upwithcrop_kernel(flat_w):
    def kernel(x_ref, a_ref, bt_ref, o_ref):
        # x_ref : (TC, H_in, W_in)  activation tile (input dtype)
        # a_ref : (H2, H_in)        fused H-upsample+pad matrix  (compute dtype, resident)
        # bt_ref: (W_in, W2)        fused W-upsample+pad matrix^T (compute dtype, resident)
        # o_ref : (TC, H2, W2)
        tc, h_in, w_in = x_ref.shape
        h2 = a_ref.shape[0]
        w2 = bt_ref.shape[1]
        cdt = bt_ref.dtype                       # bf16 for bf16 activations, else f32
        x = x_ref[...].astype(cdt)
        bt = bt_ref[...]

        # ---- W interpolation (+ W pad/crop) --------------------------------
        if flat_w:
            # One long-M 2-D MXU matmul over the whole channel tile: no B^T
            # broadcast, no per-channel MXU issue/drain.  Reshapes only merge /
            # split leading dims on sublane-aligned boundaries (free).
            t1 = jnp.dot(x.reshape(tc * h_in, w_in), bt,
                         preferred_element_type=jnp.float32)
            tmp = t1.reshape(tc, h_in, w2).astype(cdt)
        else:
            # Fallback when H_in is not sublane-aligned (the flat reshape would
            # force a relayout): batched form, identical numerics.
            bt_b = jnp.broadcast_to(bt[None], (tc, w_in, w2))
            tmp = jnp.einsum("chw,cwv->chv", x, bt_b,
                             preferred_element_type=jnp.float32).astype(cdt)

        # ---- H interpolation (+ H pad/crop) --------------------------------
        # The H contraction is per-channel; Pallas/Mosaic dot_general lowers
        # only 2-D or leading-batch forms, so this stays a batched matmul with
        # a broadcast of A (charged to the VMEM budget in the wrapper).
        # TODO(synk): for large H_in/W_in (>~128, MXU-bound regime) switch to a
        # VPU lerp exploiting the <=2 nonzeros per row of A / B^T.
        a_b = jnp.broadcast_to(a_ref[...][None], (tc, h2, h_in))
        out = jnp.einsum("cuh,chv->cuv", a_b, tmp,
                         preferred_element_type=jnp.float32)
        o_ref[...] = out.astype(o_ref.dtype)

    return kernel


# ---------------------------------------------------------------------------
# Wrapper
# ---------------------------------------------------------------------------
def upwithcrop_forward(x1, x2, *, vmem_budget_bytes=None):
    """Pallas equivalent of UpwithCrop.forward(x1, x2).

    x1: (N, C, H, W).  x2: only its spatial shape (dims 2, 3) is used.
    Returns x1 bilinearly upsampled 2x (align_corners=True) and zero-padded /
    cropped to x2's spatial size, NCHW layout, x1's dtype.
    """
    N, C, H_in, W_in = x1.shape
    H2, W2 = int(x2.shape[2]), int(x2.shape[3])
    H_up, W_up = 2 * H_in, 2 * W_in
    diffY, diffX = H2 - H_up, W2 - W_up
    pad_top, pad_left = diffY // 2, diffX // 2     # Python floor div == torch // semantics

    in_dtype = x1.dtype
    compute_dtype = jnp.bfloat16 if in_dtype == jnp.bfloat16 else jnp.float32
    in_b = np.dtype(in_dtype).itemsize
    c_b = np.dtype(compute_dtype).itemsize

    a = jnp.asarray(_up_pad_matrix(H_in, pad_top, H2), dtype=compute_dtype)     # (H2, H_in)
    bt = jnp.asarray(_up_pad_matrix(W_in, pad_left, W2).T, dtype=compute_dtype)  # (W_in, W2)

    nc = N * C
    x_flat = x1.reshape(nc, H_in, W_in)            # free reshape, stays NCHW-native

    # --- per-generation VMEM limit (64 MiB of 128 on v5e/v6e, 32 MiB of 64 on v7x)
    try:
        vmem_cap = int(getattr(pltpu.get_tpu_info(), "vmem_capacity_bytes", 128 << 20))
    except Exception:
        vmem_cap = 128 << 20
    vmem_limit = max(16 << 20, min(vmem_cap // 2, 64 << 20))
    if vmem_budget_bytes is None:
        vmem_budget_bytes = (vmem_limit * 3) // 4  # headroom for Mosaic internal scratch

    # --- (sublane, 128-lane)-padded VMEM accounting -> channel tile size
    sublane_c = _SUBLANE.get(c_b, 8)
    flat_w = (H_in % max(sublane_c, 8) == 0)       # flat reshapes stay layout-preserving
    fixed = 2 * (_padded_tile_bytes(H2, H_in, c_b) + _padded_tile_bytes(W_in, W2, c_b))
    per_chan = (
        2 * _padded_tile_bytes(H_in, W_in, in_b)   # double-buffered input tile
        + 2 * _padded_tile_bytes(H2, W2, in_b)     # double-buffered output tile
        + _padded_tile_bytes(H_in, W_in, c_b)      # compute-dtype copy of x
        + _padded_tile_bytes(H_in, W2, 4)          # f32 W-interp accumulator
        + _padded_tile_bytes(H_in, W2, c_b)        # compute-dtype intermediate
        + _padded_tile_bytes(H2, H_in, c_b)        # broadcast A
        + _padded_tile_bytes(W_in, W2, c_b)        # broadcast B^T (fallback path only)
        + _padded_tile_bytes(H2, W2, 4)            # f32 result
        + _padded_tile_bytes(H2, W2, in_b)         # store staging
    )
    cap = max(1, (vmem_budget_bytes - fixed) // per_chan)
    tc = _pick_tile_channels(nc, cap)
    grid = (_ceil_div(nc, tc),)                    # ragged last tile allowed

    flops = 2 * nc * (H_in * W_in * W2 + H_in * W2 * H2)
    bytes_accessed = nc * (H_in * W_in + H2 * W2) * in_b + (H2 * H_in + W_in * W2) * c_b

    out_flat = pl.pallas_call(
        _make_upwithcrop_kernel(flat_w),
        out_shape=jax.ShapeDtypeStruct((nc, H2, W2), in_dtype),
        grid_spec=pltpu.PrefetchScalarGridSpec(
            num_scalar_prefetch=0,
            grid=grid,
            in_specs=[
                pl.BlockSpec((tc, H_in, W_in), lambda i: (i, 0, 0)),
                pl.BlockSpec((H2, H_in), lambda i: (0, 0)),   # resident across steps
                pl.BlockSpec((W_in, W2), lambda i: (0, 0)),   # resident across steps
            ],
            out_specs=pl.BlockSpec((tc, H2, W2), lambda i: (i, 0, 0)),
        ),
        compiler_params=pltpu.CompilerParams(
            dimension_semantics=("parallel",),
            vmem_limit_bytes=int(vmem_limit),
        ),
        cost_estimate=pl.CostEstimate(
            flops=int(flops), transcendentals=0, bytes_accessed=int(bytes_accessed)),
    )(x_flat, a, bt)

    return out_flat.reshape(N, C, H2, W2)          # free reshape back to NCHW


# ---------------------------------------------------------------------------
# NumPy reference (torch Upsample(2x, bilinear, align_corners=True) + F.pad,
# including negative-pad == crop semantics)
# ---------------------------------------------------------------------------
def _ref_upwithcrop(x1, x2_shape):
    x = np.asarray(x1).astype(np.float64)
    N, C, H, W = x.shape
    Ho, Wo = 2 * H, 2 * W
    H2, W2 = int(x2_shape[2]), int(x2_shape[3])
    hs = np.arange(Ho) * (H - 1) / max(Ho - 1, 1)
    ws = np.arange(Wo) * (W - 1) / max(Wo - 1, 1)
    h0 = np.floor(hs).astype(np.int64); h1 = np.minimum(h0 + 1, H - 1); fh = hs - h0
    w0 = np.floor(ws).astype(np.int64); w1 = np.minimum(w0 + 1, W - 1); fw = ws - w0
    g00 = x[:, :, h0][:, :, :, w0]; g01 = x[:, :, h0][:, :, :, w1]
    g10 = x[:, :, h1][:, :, :, w0]; g11 = x[:, :, h1][:, :, :, w1]
    fh_ = fh[None, None, :, None]; fw_ = fw[None, None, None, :]
    up = ((1 - fh_) * (1 - fw_) * g00 + (1 - fh_) * fw_ * g01
          + fh_ * (1 - fw_) * g10 + fh_ * fw_ * g11)

    def pad_or_crop(arr, axis, before, after):
        if before < 0:
            arr = arr.take(range(-before, arr.shape[axis]), axis=axis); before = 0
        if after < 0:
            arr = arr.take(range(0, arr.shape[axis] + after), axis=axis); after = 0
        widths = [(0, 0)] * arr.ndim
        widths[axis] = (before, after)
        return np.pad(arr, widths)

    dY, dX = H2 - Ho, W2 - Wo
    up = pad_or_crop(up, 2, dY // 2, dY - dY // 2)
    up = pad_or_crop(up, 3, dX // 2, dX - dX // 2)
    return up


if __name__ == "__main__":
    key = jax.random.PRNGKey(0)
    k1, k2 = jax.random.split(key)

    # x1: (N, C, H, W); x2 only contributes its spatial size (channels may differ).
    x1 = jax.random.normal(k1, (2, 4, 16, 16), jnp.float32)

    # Case 1 (f32): asymmetric zero-padding (37x35 target around the 32x32 upsample).
    x2a = jax.random.normal(k2, (2, 8, 37, 35), jnp.float32)
    ya = jax.block_until_ready(upwithcrop_forward(x1, x2a))
    assert ya.shape == (2, 4, 37, 35)
    # Documented accuracy contract: MXU matmuls at default (bf16-pass) precision.
    np.testing.assert_allclose(np.asarray(ya), _ref_upwithcrop(x1, x2a.shape),
                               atol=1e-2, rtol=2e-2)

    # Case 2 (f32): exact-size target (no padding at all).
    x2b = jnp.zeros((2, 8, 32, 32), jnp.float32)
    yb = jax.block_until_ready(upwithcrop_forward(x1, x2b))
    assert yb.shape == (2, 4, 32, 32)
    np.testing.assert_allclose(np.asarray(yb), _ref_upwithcrop(x1, x2b.shape),
                               atol=1e-2, rtol=2e-2)

    # Case 3 (f32): cropping (negative F.pad) down to a 30x29 target.
    x2c = jnp.zeros((2, 8, 30, 29), jnp.float32)
    yc = jax.block_until_ready(upwithcrop_forward(x1, x2c))
    assert yc.shape == (2, 4, 30, 29)
    np.testing.assert_allclose(np.asarray(yc), _ref_upwithcrop(x1, x2c.shape),
                               atol=1e-2, rtol=2e-2)

    # Case 4 (bf16): bf16 activations take the bf16 MXU path.
    x1b = x1.astype(jnp.bfloat16)
    yd = jax.block_until_ready(upwithcrop_forward(x1b, x2a))
    assert yd.shape == (2, 4, 37, 35) and yd.dtype == jnp.bfloat16
    np.testing.assert_allclose(np.asarray(yd).astype(np.float32),
                               _ref_upwithcrop(x1b, x2a.shape),
                               atol=8e-2, rtol=5e-2)

    print("KERNEL_OK")
</pallas_src>

<mosaic_0001>
module attributes {stable_mosaic.version = 11 : i64} {
  func.func @kernel(%arg0: i32, %arg1: memref<2x16x16xf32, #tpu.memory_space<vmem>>, %arg2: memref<37x16xf32, #tpu.memory_space<vmem>>, %arg3: memref<16x35xf32, #tpu.memory_space<vmem>>, %arg4: memref<2x37x35xf32, #tpu.memory_space<vmem>>) attributes {dimension_semantics = [#tpu.dimension_semantics<parallel>], iteration_bounds = array<i64: 4>, scalar_prefetch = 0 : i64, scratch_operands = 0 : i64, tpu.core_type = #tpu.core_type<tc>, window_params = [{transform_indices = @transform_0, window_bounds = array<i64: 2, 16, 16>}, {pipeline_mode = #tpu.pipeline_mode<synchronous>, transform_indices = @transform_1, window_bounds = array<i64: 37, 16>}, {pipeline_mode = #tpu.pipeline_mode<synchronous>, transform_indices = @transform_2, window_bounds = array<i64: 16, 35>}, {transform_indices = @transform_3, window_bounds = array<i64: 2, 37, 35>}]} {
    %c0 = arith.constant 0 : index
    %c0_0 = arith.constant 0 : index
    %c0_1 = arith.constant 0 : index
    %0 = vector.load %arg1[%c0, %c0_0, %c0_1] : memref<2x16x16xf32, #tpu.memory_space<vmem>>, vector<2x16x16xf32>
    %c0_2 = arith.constant 0 : index
    %c0_3 = arith.constant 0 : index
    %1 = vector.load %arg3[%c0_2, %c0_3] : memref<16x35xf32, #tpu.memory_space<vmem>>, vector<16x35xf32>
    %2 = vector.shape_cast %0 : vector<2x16x16xf32> to vector<32x16xf32>
    %cst = arith.constant dense<0.000000e+00> : vector<32x35xf32>
    %3 = tpu.matmul %2, %1, %cst {dimension_numbers = #tpu.dot_dimension_numbers<[1], [0], [0], [1], [0, 0, 1, 1], [], []>} : vector<32x16xf32>, vector<16x35xf32>, vector<32x35xf32> -> vector<32x35xf32>
    %4 = vector.shape_cast %3 : vector<32x35xf32> to vector<2x16x35xf32>
    %c0_4 = arith.constant 0 : index
    %c0_5 = arith.constant 0 : index
    %5 = vector.load %arg2[%c0_4, %c0_5] : memref<37x16xf32, #tpu.memory_space<vmem>>, vector<37x16xf32>
    %6 = vector.shape_cast %5 : vector<37x16xf32> to vector<1x37x16xf32>
    %7 = vector.shape_cast %6 : vector<1x37x16xf32> to vector<1x37x16xf32>
    %8 = vector.broadcast %7 : vector<1x37x16xf32> to vector<2x37x16xf32>
    "tpu.trace_start"() <{level = 10 : i32, message = "cuh,chv->cuv"}> : () -> ()
    %cst_6 = arith.constant dense<0.000000e+00> : vector<2x37x35xf32>
    %9 = tpu.matmul %8, %4, %cst_6 {dimension_numbers = #tpu.dot_dimension_numbers<[2], [1], [1], [2], [0, 0, 0, 1, 1, 2], [0], [0]>} : vector<2x37x16xf32>, vector<2x16x35xf32>, vector<2x37x35xf32> -> vector<2x37x35xf32>
    "tpu.trace_stop"() : () -> ()
    %c0_7 = arith.constant 0 : index
    %c0_8 = arith.constant 0 : index
    %c0_9 = arith.constant 0 : index
    %10 = vector.load %arg4[%c0_7, %c0_8, %c0_9] : memref<2x37x35xf32, #tpu.memory_space<vmem>>, vector<2x37x35xf32>
    tpu.vector_store %arg4[%c0_7, %c0_8, %c0_9], %9 {strides = array<i32>} : memref<2x37x35xf32, #tpu.memory_space<vmem>>, vector<2x37x35xf32>,
    return
  }
  func.func @transform_0(%arg0: i32) -> (i32, i32, i32) {
    %c0_i32 = arith.constant 0 : i32
    %c0_i32_0 = arith.constant 0 : i32
    %c0_i32_1 = arith.constant 0 : i32
    return %arg0, %c0_i32, %c0_i32_0 : i32, i32, i32
  }
  func.func @transform_1(%arg0: i32) -> (i32, i32) {
    %c0_i32 = arith.constant 0 : i32
    %c0_i32_0 = arith.constant 0 : i32
    %c0_i32_1 = arith.constant 0 : i32
    return %c0_i32, %c0_i32_0 : i32, i32
  }
  func.func @transform_2(%arg0: i32) -> (i32, i32) {
    %c0_i32 = arith.constant 0 : i32
    %c0_i32_0 = arith.constant 0 : i32
    %c0_i32_1 = arith.constant 0 : i32
    return %c0_i32, %c0_i32_0 : i32, i32
  }
  func.func @transform_3(%arg0: i32) -> (i32, i32, i32) {
    %c0_i32 = arith.constant 0 : i32
    %c0_i32_0 = arith.constant 0 : i32
    %c0_i32_1 = arith.constant 0 : i32
    return %arg0, %c0_i32, %c0_i32_0 : i32, i32, i32
  }
}

</mosaic_0001>

<llo_original>
// kernel: tpu_custom_call.1
$region0: #{tpu_custom_call.1}
  #allocation0 [shape = 'u32[]', space=smem, size = 0x4, offset = 0x4, fixed_abs, tag = 'smem constant byte address 0x4 - core index']
  #allocation1 [shape = 'u32[72,128]{1,0:T(1,128)}', space=vmem, size = 0x9000, scoped, tag = 'internal scratch']
  %s0 = inlined_call_operand.hbm [shape: f32[8,16,16], index: 0, kind: input, shape index: {}]
  %s1 = inlined_call_operand.vmem [shape: f32[37,16], index: 1, kind: input, shape index: {}]
  %s2 = inlined_call_operand.vmem [shape: f32[16,35], index: 2, kind: input, shape index: {}]
  %s3 = inlined_call_operand.vmem [shape: f32[8,37,35], index: 3, kind: output, shape index: {}]
  %s4 = sld [smem:[#allocation0]]
  $region49: #{tpu_custom_call.1} parent=0
    _
  %s6 = ssub.s32 1, %s4
  %s7 = scalar_select 0, %s6, %s4
  $region1: #{tpu_custom_call.1} parent=0
    #allocation2 [shape = 'u8[32768]{0}', space=vmem, size = 0x8000, scoped, tag = 'input window, operand 0']
    #allocation3 [shape = 's32[2]{0}', space=sflag, size = 0x8, scoped, tag = 'scoped memory for tpu_custom_call.1']
    %8 = vsyncpa [#allocation3], 0
    %s9 = scalar_lea.sflag [#allocation3], 1
    %10 = vsyncpa %s9, 0
    loop: start=0, step=1, limit=6
    $region2: #{tpu_custom_call.1} parent=1 // loop_pre_header
      _
    $region3: #{tpu_custom_call.1} parent=1 // loop_header
      %s12 = sphi 0, %s16
      %p13 = scmp.ge.s32.totalorder %s12, 6
      %s22 = sphi 0, %s24
      %s25 = sphi 0, %s22
      %s26 = sphi 0, %s25
      %s42 = sphi 0, %s26
      %s46 = sphi 0, %s46
      %s48 = sphi 0, %s46
      %s49 = sphi 0, %s48
      %s63 = sphi 0, %s49
      %s67 = sphi 0, %s67
      %s69 = sphi 0, %s67
      %s70 = sphi 0, %s69
      %s84 = sphi 0, %s70
      %s90 = sphi 0, %s92
      %s93 = sphi 0, %s90
      %s94 = sphi 0, %s93
      %s110 = sphi 0, %s94
    $region4: #{tpu_custom_call.1} parent=1 // loop_header_branch
      %15 = sbr.rel (%p13) target = $region8
    $region5: #{tpu_custom_call.1} parent=1 // loop_body
      %s17 = ssub.s32 %s12, 1
      %s18 = ssub.s32 %s12, 2
      %s19 = sadd.s32 %s12, 1
      %s20 = ssub.s32 %s12, %s19
      %p21 = scmp.eq.s32.totalorder %s20, 0
      %s23 = sadd.s32 %s22, 1
      %s24 = scalar_select %p21, %s22, %s23
      %p27 = pneg %p21
      %p28 = scmp.eq.s32.totalorder %s12, 3
      %p29 = por %p27, %p28
      %p30 = scmp.ne.s32.totalorder %s22, %s25
      %p31 = scmp.eq.s32.totalorder %s12, 0
      %p32 = por %p30, %p31
      %p33 = scmp.ne.s32.totalorder %s22, %s25
      %p34 = scmp.eq.s32.totalorder %s17, 3
      %p35 = por %p33, %p34
      %p36 = scmp.ne.s32.totalorder %s25, %s26
      %p37 = scmp.eq.s32.totalorder %s17, 0
      %p38 = por %p36, %p37
      %p39 = scmp.ne.s32.totalorder %s25, %s26
      %p40 = scmp.eq.s32.totalorder %s18, 3
      %p41 = por %p39, %p40
      %p43 = scmp.ne.s32.totalorder %s26, %s42
      %p44 = scmp.eq.s32.totalorder %s18, 0
      %p45 = por %p43, %p44
      %s47 = sadd.s32 %s46, 1
      %p50 = scmp.eq.s32.totalorder %s12, 3
      %p51 = scmp.ne.s32.totalorder %s46, %s48
      %p52 = scmp.eq.s32.totalorder %s12, 0
      %p53 = por %p51, %p52
      %p54 = scmp.ne.s32.totalorder %s46, %s48
      %p55 = scmp.eq.s32.totalorder %s17, 3
      %p56 = por %p54, %p55
      %p57 = scmp.ne.s32.totalorder %s48, %s49
      %p58 = scmp.eq.s32.totalorder %s17, 0
      %p59 = por %p57, %p58
      %p60 = scmp.ne.s32.totalorder %s48, %s49
      %p61 = scmp.eq.s32.totalorder %s18, 3
      %p62 = por %p60, %p61
      %p64 = scmp.ne.s32.totalorder %s49, %s63
      %p65 = scmp.eq.s32.totalorder %s18, 0
      %p66 = por %p64, %p65
      %s68 = sadd.s32 %s67, 1
      %p71 = scmp.eq.s32.totalorder %s12, 3
      %p72 = scmp.ne.s32.totalorder %s67, %s69
      %p73 = scmp.eq.s32.totalorder %s12, 0
      %p74 = por %p72, %p73
      %p75 = scmp.ne.s32.totalorder %s67, %s69
      %p76 = scmp.eq.s32.totalorder %s17, 3
      %p77 = por %p75, %p76
      %p78 = scmp.ne.s32.totalorder %s69, %s70
      %p79 = scmp.eq.s32.totalorder %s17, 0
      %p80 = por %p78, %p79
      %p81 = scmp.ne.s32.totalorder %s69, %s70
      %p82 = scmp.eq.s32.totalorder %s18, 3
      %p83 = por %p81, %p82
      %p85 = scmp.ne.s32.totalorder %s70, %s84
      %p86 = scmp.eq.s32.totalorder %s18, 0
      %p87 = por %p85, %p86
      %s88 = ssub.s32 %s12, %s19
      %p89 = scmp.eq.s32.totalorder %s88, 0
      %s91 = sadd.s32 %s90, 1
      %s92 = scalar_select %p89, %s90, %s91
      %p95 = pneg %p89
      %p96 = scmp.eq.s32.totalorder %s12, 3
      %p97 = por %p95, %p96
      %p98 = scmp.ne.s32.totalorder %s90, %s93
      %p99 = scmp.eq.s32.totalorder %s12, 0
      %p100 = por %p98, %p99
      %p101 = scmp.ne.s32.totalorder %s90, %s93
      %p102 = scmp.eq.s32.totalorder %s17, 3
      %p103 = por %p101, %p102
      %p104 = scmp.ne.s32.totalorder %s93, %s94
      %p105 = scmp.eq.s32.totalorder %s17, 0
      %p106 = por %p104, %p105
      %p107 = scmp.ne.s32.totalorder %s93, %s94
      %p108 = scmp.eq.s32.totalorder %s18, 3
      %p109 = por %p107, %p108
      %p111 = scmp.ne.s32.totalorder %s94, %s110
      %p112 = scmp.eq.s32.totalorder %s18, 0
      %p113 = por %p111, %p112
      %p114 = scmp.le.s32.totalorder 1, %s12
      %p115 = scmp.lt.s32.totalorder %s12, 5
      %p116 = pnand %p114, %p115
      %p117 = pneg %p116
      // Predicated region
      $region9: #{tpu_custom_call.1} parent=5 // pred_check
        _
      $region10: #{tpu_custom_call.1} parent=5 // pred_check_branch
        %119 = sbr.rel (%p116) target = $region12
      $region11: #{tpu_custom_call.1} parent=5 // pred_region
        %s120 = ssub.s32 %s12, 1
        // Predicated region
        $region13: #{tpu_custom_call.1} parent=11 // pred_check
          %p121 = pneg %p59
        $region14: #{tpu_custom_call.1} parent=11 // pred_check_branch
          %123 = sbr.rel (%p121) target = $region16
        $region15: #{tpu_custom_call.1} parent=11 // pred_region
          _
        $region16: #{tpu_custom_call.1} parent=11 // pred_fallthru
          _
        // Predicated region
        $region17: #{tpu_custom_call.1} parent=11 // pred_check
          %p124 = pneg %p80
        $region18: #{tpu_custom_call.1} parent=11 // pred_check_branch
          %126 = sbr.rel (%p124) target = $region20
        $region19: #{tpu_custom_call.1} parent=11 // pred_region
          _
        $region20: #{tpu_custom_call.1} parent=11 // pred_fallthru
          _
      $region12: #{tpu_custom_call.1} parent=5 // pred_fallthru
        _
      %p127 = scmp.lt.s32.totalorder %s12, 4
      // Predicated region
      $region21: #{tpu_custom_call.1} parent=5 // pred_check
        %p128 = pneg %p127
      $region22: #{tpu_custom_call.1} parent=5 // pred_check_branch
        %130 = sbr.rel (%p128) target = $region24
      $region23: #{tpu_custom_call.1} parent=5 // pred_region
        // Predicated region
        $region25: #{tpu_custom_call.1} parent=23 // pred_check
          %p131 = pneg %p32
        $region26: #{tpu_custom_call.1} parent=23 // pred_check_branch
          %133 = sbr.rel (%p131) target = $region28
        $region27: #{tpu_custom_call.1} parent=23 // pred_region
          %s134 = sand.u32 %s22, 1
          %s135 = scalar_lea.sflag [#allocation3], %s134
          %s136 = sand.u32 %s22, 1
          %s137 = smul.addr %s136, 32
          %s138 = scalar_lea.vmem [#allocation2], %s137
          %s139 = smul.u32 2, %s12
          %141 = vsyncadd %s135, 0
          %s142 = smul.addr %s139, 2
          %s143 = smul.addr %s142, 8
          %s144 = scalar_lea.hbm %s0, %s143
          %s145 = sshll.u32 %s144, 4
          %s146 = int_to_ptr.hbm [resolvable:$true] %s145
          %s147 = sshll.u32 %s138, 4
          %s148 = int_to_ptr.vmem [resolvable:$true] %s147
          %153 = dma.hbm_to_vmem [thread:$0]  %s146, 512, %s148, %s135, 128, 128, 8
        $region28: #{tpu_custom_call.1} parent=23 // pred_fallthru
          _
      $region24: #{tpu_custom_call.1} parent=5 // pred_fallthru
        _
      %p154 = scmp.le.s32.totalorder 1, %s12
      %p155 = scmp.lt.s32.totalorder %s12, 5
      %p156 = pnand %p154, %p155
      %p157 = pneg %p156
      // Predicated region
      $region29: #{tpu_custom_call.1} parent=5 // pred_check
        _
      $region30: #{tpu_custom_call.1} parent=5 // pred_check_branch
        %159 = sbr.rel (%p156) target = $region32
      $region31: #{tpu_custom_call.1} parent=5 // pred_region
        %s160 = ssub.s32 %s12, 1
        %s161 = sand.u32 %s25, 1
        %s162 = scalar_lea.sflag [#allocation3], %s161
        %s163 = sand.u32 %s25, 1
        %s164 = smul.addr %s163, 32
        %s165 = scalar_lea.vmem [#allocation2], %s164
        // Predicated region
        $region33: #{tpu_custom_call.1} parent=31 // pred_check
          %p166 = pneg %p38
        $region34: #{tpu_custom_call.1} parent=31 // pred_check_branch
          %168 = sbr.rel (%p166) target = $region36
        $region35: #{tpu_custom_call.1} parent=31 // pred_region
          %170 = dma.done %s162, 512
        $region36: #{tpu_custom_call.1} parent=31 // pred_fallthru
          _
        %s171 = sand.u32 %s25, 1
        %s172 = scalar_lea.sflag [#allocation3], %s171
        %s173 = sand.u32 %s25, 1
        %s174 = smul.addr %s173, 32
        %s175 = scalar_lea.vmem [#allocation2], %s174
        %p176 = pneg %p38
        %p177 = pneg %p35
        %p178 = pneg %p59
        %p179 = pneg %p56
        %p180 = pneg %p80
        %p181 = pneg %p77
        %p182 = pneg %p106
        %p183 = pneg %p103
        %s184 = smul.u32 2, %s17
        %p185 = scmp.lt.s32.totalorder %s184, 7
        %s186 = scalar_select %p185, %s184, 7
        %s187 = smul.addr %s186, 5
        %s188 = smul.addr %s187, 8
        %s189 = scalar_lea.vmem %s3, %s188
        %s190 = smul.u32 2, %s17
        %s191 = smul.u32 2, %s17
        %p192 = scmp.lt.s32.totalorder %s191, 7
        %s193 = scalar_select %p192, %s191, 7
        %s194 = smul.addr %s193, 5
        %s195 = smul.addr %s194, 8
        %s196 = scalar_lea.vmem %s3, %s195
        %s197 = smul.u32 2, %s17
        %v198 = vld [vmem:[%s165] sm:$0xff]
        %v199 = vld [vmem:[%s165 + $0x8] sm:$0xff]
        %v200 = vld [vmem:[%s165 + $0x10] sm:$0xff]
        %v201 = vld [vmem:[%s165 + $0x18] sm:$0xff]
        %v202 = vld [vmem:[%s2] sm:$0xff]
        %v203 = vld [vmem:[%s2 + $0x8] sm:$0xff]
        %vm204 = vcmask 130048
        %v206 = vsel %vm204, %v198, 0
        %v209 = vsel %vm204, %v199, 0
        %v212 = vsel %vm204, %v200, 0
        %v215 = vsel %vm204, %v201, 0
        %217 = vmatpush.msra.mxu0 0.0
        %218 = vmatpush.msra.mxu0 0.0
        %219 = vmatpush.msra.mxu0 0.0
        %220 = vmatpush.msra.mxu0 0.0
        %221 = vmatpush.msra.mxu0 0.0
        %222 = vmatpush.msra.mxu0 0.0
        %223 = vmatpush.msra.mxu0 0.0
        %224 = vmatpush.msra.mxu0 0.0
        %225 = vmatpush.msra.mxu0 0.0
        %226 = vmatpush.msra.mxu0 0.0
        %227 = vmatpush.msra.mxu0 0.0
        %228 = vmatpush.msra.mxu0 0.0
        %229 = vmatpush.msra.mxu0 0.0
        %230 = vmatpush.msra.mxu0 0.0
        %231 = vmatpush.msra.mxu0 %v203
        %232 = vmatpush.msra.mxu0 %v202
        %233 = vmatmul.f32.gmra.mxu0 %v206
        %v234 = vpop.f32.mrf.mxu0
        %v235 = vadd.f32 0.0, %v234
        %236 = vmatmul.f32.gmra.mxu0 %v209
        %v237 = vpop.f32.mrf.mxu0
        %v238 = vadd.f32 0.0, %v237
        %239 = vmatmul.f32.gmra.mxu0 %v212
        %v240 = vpop.f32.mrf.mxu0
        %v241 = vadd.f32 0.0, %v240
        %242 = vmatmul.f32.gmra.mxu0 %v215
        %v243 = vpop.f32.mrf.mxu0
        %v244 = vadd.f32 0.0, %v243
        %245 = vdwg.mxu0
        %v246 = vld [vmem:[%s1] sm:$0xff]
        %v247 = vld [vmem:[%s1 + $0x8] sm:$0xff]
        %v248 = vld [vmem:[%s1 + $0x10] sm:$0xff]
        %v249 = vld [vmem:[%s1 + $0x18] sm:$0xff]
        %v250 = vld [vmem:[%s1 + $0x20] sm:$0x1f]
        %v252 = vsel %vm204, %v246, 0
        %v255 = vsel %vm204, %v247, 0
        %v258 = vsel %vm204, %v248, 0
        %v261 = vsel %vm204, %v249, 0
        %v264 = vsel %vm204, %v250, 0
        %266 = vmatpush.msra.mxu0 0.0
        %267 = vmatpush.msra.mxu0 0.0
        %268 = vmatpush.msra.mxu0 0.0
        %269 = vmatpush.msra.mxu0 0.0
        %270 = vmatpush.msra.mxu0 0.0
        %271 = vmatpush.msra.mxu0 0.0
        %272 = vmatpush.msra.mxu0 0.0
        %273 = vmatpush.msra.mxu0 0.0
        %274 = vmatpush.msra.mxu0 0.0
        %275 = vmatpush.msra.mxu0 0.0
        %276 = vmatpush.msra.mxu0 0.0
        %277 = vmatpush.msra.mxu0 0.0
        %278 = vmatpush.msra.mxu0 0.0
        %279 = vmatpush.msra.mxu0 0.0
        %280 = vmatpush.msra.mxu0 %v238
        %281 = vmatpush.msra.mxu0 %v235
        %282 = vmatmul.f32.gmra.mxu0 %v252
        %v283 = vpop.f32.mrf.mxu0
        %v284 = vadd.f32 0.0, %v283
        %285 = vmatmul.f32.gmra.mxu0 %v255
        %v286 = vpop.f32.mrf.mxu0
        %v287 = vadd.f32 0.0, %v286
        %288 = vmatmul.f32.gmra.mxu0 %v258
        %v289 = vpop.f32.mrf.mxu0
        %v290 = vadd.f32 0.0, %v289
        %291 = vmatmul.f32.gmra.mxu0 %v261
        %v292 = vpop.f32.mrf.mxu0
        %v293 = vadd.f32 0.0, %v292
        %294 = vmatmul.f32.gmra.mxu0 %v264
        %v295 = vpop.f32.mrf.mxu0
        %v296 = vadd.f32 0.0, %v295
        %297 = vdwg.mxu0
        %298 = vmatpush.msra.mxu0 0.0
        %299 = vmatpush.msra.mxu0 0.0
        %300 = vmatpush.msra.mxu0 0.0
        %301 = vmatpush.msra.mxu0 0.0
        %302 = vmatpush.msra.mxu0 0.0
        %303 = vmatpush.msra.mxu0 0.0
        %304 = vmatpush.msra.mxu0 0.0
        %305 = vmatpush.msra.mxu0 0.0
        %306 = vmatpush.msra.mxu0 0.0
        %307 = vmatpush.msra.mxu0 0.0
        %308 = vmatpush.msra.mxu0 0.0
        %309 = vmatpush.msra.mxu0 0.0
        %310 = vmatpush.msra.mxu0 0.0
        %311 = vmatpush.msra.mxu0 0.0
        %312 = vmatpush.msra.mxu0 %v244
        %313 = vmatpush.msra.mxu0 %v241
        %314 = vmatmul.f32.gmra.mxu0 %v252
        %v315 = vpop.f32.mrf.mxu0
        %v316 = vadd.f32 0.0, %v315
        %317 = vmatmul.f32.gmra.mxu0 %v255
        %v318 = vpop.f32.mrf.mxu0
        %v319 = vadd.f32 0.0, %v318
        %320 = vmatmul.f32.gmra.mxu0 %v258
        %v321 = vpop.f32.mrf.mxu0
        %v322 = vadd.f32 0.0, %v321
        %323 = vmatmul.f32.gmra.mxu0 %v261
        %v324 = vpop.f32.mrf.mxu0
        %v325 = vadd.f32 0.0, %v324
        %326 = vmatmul.f32.gmra.mxu0 %v264
        %v327 = vpop.f32.mrf.mxu0
        %v328 = vadd.f32 0.0, %v327
        %329 = vdwg.mxu0
        %vm330 = vcmask 285696
        %331 = vst.msk [vmem:[%s196] sm:$0xff] %vm330, %v284
        %332 = vst.msk [vmem:[%s196 + $0x8] sm:$0xff] %vm330, %v287
        %333 = vst.msk [vmem:[%s196 + $0x10] sm:$0xff] %vm330, %v290
        %334 = vst.msk [vmem:[%s196 + $0x18] sm:$0xff] %vm330, %v293
        %vm335 = vcmask 282624
        %336 = vst.msk [vmem:[%s196 + $0x20] sm:$0x1f] %vm335, %v296
        %337 = vst.msk [vmem:[%s196 + $0x28] sm:$0xff] %vm330, %v316
        %338 = vst.msk [vmem:[%s196 + $0x30] sm:$0xff] %vm330, %v319
        %339 = vst.msk [vmem:[%s196 + $0x38] sm:$0xff] %vm330, %v322
        %340 = vst.msk [vmem:[%s196 + $0x40] sm:$0xff] %vm330, %v325
        %341 = vst.msk [vmem:[%s196 + $0x48] sm:$0x1f] %vm335, %v328
        %s342 = smul.u32 2, %s17
        %p343 = scmp.lt.s32.totalorder %s342, 7
        %s344 = scalar_select %p343, %s342, 7
        %s345 = smul.addr %s344, 5
        %s346 = smul.addr %s345, 8
        %s347 = scalar_lea.vmem %s3, %s346
        // Predicated region
        $region37: #{tpu_custom_call.1} parent=31 // pred_check
          %p348 = pneg %p103
        $region38: #{tpu_custom_call.1} parent=31 // pred_check_branch
          %350 = sbr.rel (%p348) target = $region40
        $region39: #{tpu_custom_call.1} parent=31 // pred_region
          %s351 = smul.u32 2, %s17
        $region40: #{tpu_custom_call.1} parent=31 // pred_fallthru
          _
      $region32: #{tpu_custom_call.1} parent=5 // pred_fallthru
        _
      %p352 = scmp.le.s32.totalorder 2, %s12
      // Predicated region
      $region41: #{tpu_custom_call.1} parent=5 // pred_check
        %p353 = pneg %p352
      $region42: #{tpu_custom_call.1} parent=5 // pred_check_branch
        %355 = sbr.rel (%p353) target = $region44
      $region43: #{tpu_custom_call.1} parent=5 // pred_region
        %s356 = ssub.s32 %s12, 2
        // Predicated region
        $region45: #{tpu_custom_call.1} parent=43 // pred_check
          %p357 = pneg %p109
        $region46: #{tpu_custom_call.1} parent=43 // pred_check_branch
          %359 = sbr.rel (%p357) target = $region48
        $region47: #{tpu_custom_call.1} parent=43 // pred_region
          %s360 = smul.u32 2, %s18
          %p361 = scmp.lt.s32.totalorder %s360, 7
          %s362 = scalar_select %p361, %s360, 7
          %s363 = smul.addr %s362, 5
          %s364 = smul.addr %s363, 8
          %s365 = scalar_lea.vmem %s3, %s364
        $region48: #{tpu_custom_call.1} parent=43 // pred_fallthru
          _
      $region44: #{tpu_custom_call.1} parent=5 // pred_fallthru
        _
    $region6: #{tpu_custom_call.1} parent=1 // loop_footer
      %s16 = sadd.s32 1, %s12
    $region7: #{tpu_custom_call.1} parent=1 // loop_footer_branch
      %11 = sbr.rel target = $region3
    $region8: #{tpu_custom_call.1} parent=1 // loop_exit
      _
    %366 = vsyncpa [#allocation3], 1
    %s367 = scalar_lea.sflag [#allocation3], 1
    %368 = vsyncpa %s367, 1

</llo_original>
